<compile_context>
chip_gen: v7x
topology: tpu7x:2x2x1
jax: 0.10.0
libtpu: 0.0.40
codegen_flags: <defaults>
</compile_context>

<pallas_src>
import math

import jax
import jax.numpy as jnp
from jax.experimental import pallas as pl
from jax.experimental.pallas import tpu as pltpu


def _linear_kernel(x_ref, w_ref, b_ref, o_ref):
    # x_ref: (TM, Dp) VMEM row tile (f32 or bf16, streamed from HBM).
    # w_ref: (Dp, P)  VMEM block-diagonal weight, f32, resident across grid.
    # b_ref: (1, 1)   SMEM scalar bias.
    # o_ref: (TM, P)  VMEM output tile (one prediction per packed example).
    x = x_ref[...].astype(jnp.float32)  # cheap VPU upcast if input is bf16
    y = jnp.dot(x, w_ref[...], preferred_element_type=jnp.float32)
    o_ref[...] = (y + b_ref[0, 0]).astype(o_ref.dtype)


def _round_up(a, b):
    return ((a + b - 1) // b) * b


def _choose_block_rows(rows, row_bytes, tile_budget_bytes, min_grid_steps=8):
    """Pick the row-tile size from a VMEM byte budget (not a row cap)."""
    br = max(1, tile_budget_bytes // max(1, row_bytes))
    br = max(128, (br // 128) * 128)
    # Keep several grid steps so the "parallel" row axis can actually be split
    # across v7x's two TensorCores and the pipeline has steps to overlap.
    cap = max(128, (pl.cdiv(rows, min_grid_steps) // 128) * 128)
    return min(br, cap)


def sgd_regressor_forward(x, weight, bias, *, block_rows=None,
                          tile_budget_bytes=8 * 1024 * 1024):
    """Pallas equivalent of SGDRegressor.forward / predict.

    x:      (N, D) float32 or bfloat16
    weight: (1, D) float32   (nn.Linear(D, 1).weight)
    bias:   (1,)   float32   (nn.Linear(D, 1).bias)
    returns (N, 1) float32
    """
    n, d = x.shape
    if x.dtype not in (jnp.dtype(jnp.float32), jnp.dtype(jnp.bfloat16)):
        x = x.astype(jnp.float32)
    weight = weight.reshape(1, d).astype(jnp.float32)
    bias2d = bias.reshape(1, 1).astype(jnp.float32)

    # Lane-dense packing: fold P = 128 // D examples into each 128-lane row.
    p = 1
    if d < 128 and 128 % d == 0 and n % (128 // d) == 0:
        p = 128 // d
    rows, dp = n // p, d * p
    x_packed = x.reshape(rows, dp)          # contiguous reshape: free in HBM

    # Block-diagonal weight: w_big[q*D + j, q] = w[j].  The (TM, Dp) @ (Dp, P)
    # matmul computes each packed example's dot product and the segmented
    # reduce in one MXU op (no in-kernel reshape / relayout needed).
    w_big = jnp.kron(jnp.eye(p, dtype=jnp.float32),
                     weight.reshape(d, 1))  # (dp, p) f32, tiny (<= 2 KiB)

    if block_rows is None:
        block_rows = _choose_block_rows(rows, dp * x.dtype.itemsize,
                                        tile_budget_bytes)
    assert block_rows >= 8 and block_rows % 8 == 0

    grid = (pl.cdiv(rows, block_rows),)     # no jnp.pad: last block is partial

    # VMEM budget from the real double-buffered footprint (+ slack).  With the
    # default ~8 MiB X tile this is 32 MiB: within v7x's 64 MiB VMEM and far
    # under v5e/v6e's 128 MiB, while still allowing larger tiles if requested.
    needed = 2 * (block_rows * dp * x.dtype.itemsize
                  + block_rows * p * 4
                  + dp * p * 4) + (2 << 20)
    vmem_limit = max(32 << 20, _round_up(needed, 1 << 20))

    out_packed = pl.pallas_call(
        _linear_kernel,
        out_shape=jax.ShapeDtypeStruct((rows, p), jnp.float32),
        grid_spec=pl.GridSpec(
            grid=grid,
            in_specs=[
                pl.BlockSpec((block_rows, dp), lambda i: (i, 0)),  # X row tile
                pl.BlockSpec((dp, p), lambda i: (0, 0)),    # weight, resident
                pl.BlockSpec(memory_space=pltpu.SMEM),       # bias scalar
            ],
            out_specs=pl.BlockSpec((block_rows, p), lambda i: (i, 0)),
        ),
        compiler_params=pltpu.CompilerParams(
            # Independent row tiles -> Mosaic may shard them across v7x's two
            # TensorCores; harmless no-op on single-TC v5e/v6e.
            dimension_semantics=("parallel",),
            vmem_limit_bytes=vmem_limit,
        ),
    )(x_packed, w_big, bias2d)

    # (rows, P) -> (N, 1): contiguous reshape, free.
    return out_packed.reshape(n, 1)


if __name__ == "__main__":
    # Small shapes consistent with the module: feature dim D=32, batch N=1000
    # (packs 4 examples per 128-lane row -> 250 packed rows, so block_rows=128
    # gives a multi-step grid with a masked partial final block and no
    # wrapper-side padding).
    N, D = 1000, 32

    key = jax.random.PRNGKey(0)
    kx, kw, kb = jax.random.split(key, 3)

    x = jax.random.normal(kx, (N, D), dtype=jnp.float32)

    # Deterministic init matching torch.nn.Linear default:
    # U(-1/sqrt(D), 1/sqrt(D)) for both weight and bias.
    bound = 1.0 / math.sqrt(D)
    weight = jax.random.uniform(kw, (1, D), minval=-bound, maxval=bound,
                                dtype=jnp.float32)
    bias = jax.random.uniform(kb, (1,), minval=-bound, maxval=bound,
                              dtype=jnp.float32)

    # f32 path, explicit small tile to exercise the multi-step pipelined grid
    # and the masked partial final block.
    out = sgd_regressor_forward(x, weight, bias, block_rows=128)
    out = jax.block_until_ready(out)
    ref = jnp.sum(x * weight, axis=-1, keepdims=True) + bias
    assert out.shape == (N, 1), out.shape
    # Tolerance allows for MXU bf16-pass accumulation of the f32 matmul on
    # older generations; structural bugs would produce O(1) errors.
    assert jnp.allclose(out, ref, atol=2e-2, rtol=2e-2), "f32 mismatch vs reference"

    # bf16 input path (halves HBM read bytes; upcast happens in-kernel) with
    # auto (byte-budget) tile sizing.
    x_bf16 = x.astype(jnp.bfloat16)
    out_bf = sgd_regressor_forward(x_bf16, weight, bias)
    out_bf = jax.block_until_ready(out_bf)
    ref_bf = jnp.sum(x_bf16.astype(jnp.float32) * weight, axis=-1,
                     keepdims=True) + bias
    assert out_bf.shape == (N, 1), out_bf.shape
    assert jnp.allclose(out_bf, ref_bf, atol=2e-2, rtol=2e-2), "bf16 mismatch vs reference"

    # TODO(synk): partial_fit (MSE loss + Adam update) is training logic, not
    # part of the forward pass, so it is intentionally not implemented here.
    print("KERNEL_OK")
</pallas_src>

<mosaic_0001>
module attributes {stable_mosaic.version = 11 : i64} {
  func.func @_linear_kernel(%arg0: i32, %arg1: memref<128x128xf32, #tpu.memory_space<vmem>>, %arg2: memref<128x4xf32, #tpu.memory_space<vmem>>, %arg3: memref<1x1xf32, #tpu.memory_space<smem>>, %arg4: memref<128x4xf32, #tpu.memory_space<vmem>>) attributes {dimension_semantics = [#tpu.dimension_semantics<parallel>], iteration_bounds = array<i64: 2>, scalar_prefetch = 0 : i64, scratch_operands = 0 : i64, tpu.core_type = #tpu.core_type<tc>, window_params = [{transform_indices = @transform_0, window_bounds = array<i64: 128, 128>}, {pipeline_mode = #tpu.pipeline_mode<synchronous>, transform_indices = @transform_1, window_bounds = array<i64: 128, 4>}, {transform_indices = @transform_2, window_bounds = array<i64: 1, 1>}, {transform_indices = @transform_3, window_bounds = array<i64: 128, 4>}]} {
    %c0 = arith.constant 0 : index
    %c0_0 = arith.constant 0 : index
    %0 = vector.load %arg1[%c0, %c0_0] : memref<128x128xf32, #tpu.memory_space<vmem>>, vector<128x128xf32>
    %c0_1 = arith.constant 0 : index
    %c0_2 = arith.constant 0 : index
    %1 = vector.load %arg2[%c0_1, %c0_2] : memref<128x4xf32, #tpu.memory_space<vmem>>, vector<128x4xf32>
    %cst = arith.constant dense<0.000000e+00> : vector<128x4xf32>
    %2 = tpu.matmul %0, %1, %cst {dimension_numbers = #tpu.dot_dimension_numbers<[1], [0], [0], [1], [0, 0, 1, 1], [], []>} : vector<128x128xf32>, vector<128x4xf32>, vector<128x4xf32> -> vector<128x4xf32>
    %c0_3 = arith.constant 0 : index
    %c0_4 = arith.constant 0 : index
    %3 = memref.load %arg3[%c0_3, %c0_4] : memref<1x1xf32, #tpu.memory_space<smem>>
    %4 = vector.broadcast %3 : f32 to vector<128x4xf32>
    %5 = arith.addf %2, %4 : vector<128x4xf32>
    %c0_5 = arith.constant 0 : index
    %c0_6 = arith.constant 0 : index
    %6 = vector.load %arg4[%c0_5, %c0_6] : memref<128x4xf32, #tpu.memory_space<vmem>>, vector<128x4xf32>
    tpu.vector_store %arg4[%c0_5, %c0_6], %5 {strides = array<i32>} : memref<128x4xf32, #tpu.memory_space<vmem>>, vector<128x4xf32>,
    return
  }
  func.func @transform_0(%arg0: i32) -> (i32, i32) {
    %c0_i32 = arith.constant 0 : i32
    %c0_i32_0 = arith.constant 0 : i32
    return %arg0, %c0_i32 : i32, i32
  }
  func.func @transform_1(%arg0: i32) -> (i32, i32) {
    %c0_i32 = arith.constant 0 : i32
    %c0_i32_0 = arith.constant 0 : i32
    %c0_i32_1 = arith.constant 0 : i32
    return %c0_i32, %c0_i32_0 : i32, i32
  }
  func.func @transform_2(%arg0: i32) -> (i32, i32) {
    %c0_i32 = arith.constant 0 : i32
    %c0_i32_0 = arith.constant 0 : i32
    %c0_i32_1 = arith.constant 0 : i32
    return %c0_i32, %c0_i32_0 : i32, i32
  }
  func.func @transform_3(%arg0: i32) -> (i32, i32) {
    %c0_i32 = arith.constant 0 : i32
    %c0_i32_0 = arith.constant 0 : i32
    return %arg0, %c0_i32 : i32, i32
  }
}

</mosaic_0001>

<llo_original>
// kernel: tpu_custom_call.1
$region0: #{tpu_custom_call.1}
  #allocation0 [shape = 'u32[]', space=smem, size = 0x4, offset = 0x4, fixed_abs, tag = 'smem constant byte address 0x4 - core index']
  #allocation1 [shape = 'u32[144,128]{1,0:T(1,128)}', space=vmem, size = 0x12000, scoped, tag = 'internal scratch']
  #allocation2 [shape = 'f32[1,1]{1,0:T(1,128)S(6)}', space=smem, size = 0x200, scoped, tag = 'scoped memory for tpu_custom_call.1']
  %s0 = inlined_call_operand.hbm [shape: f32[250,128], index: 0, kind: input, shape index: {}]
  %s1 = inlined_call_operand.vmem [shape: f32[128,4], index: 1, kind: input, shape index: {}]
  %s2 = inlined_call_operand.<no memory space> [shape: f32[1,1], index: 2, kind: input, shape index: {}]
  %s3 = inlined_call_operand.vmem [shape: f32[250,4], index: 3, kind: output, shape index: {}]
  %s4 = sld [smem:[#allocation0]]
  $region49: #{tpu_custom_call.1} parent=0
    _
  %s6 = ssub.s32 1, %s4
  %s7 = scalar_select 0, %s6, %s4
  %8 = sst [smem:[#allocation2]] %s2
  $region1: #{tpu_custom_call.1} parent=0
    #allocation3 [shape = 'u8[131072]{0}', space=vmem, size = 0x20000, scoped, tag = 'input window, operand 0']
    #allocation4 [shape = 's32[2]{0}', space=sflag, size = 0x8, scoped, tag = 'scoped memory for tpu_custom_call.1']
    %9 = vsyncpa [#allocation4], 0
    %s10 = scalar_lea.sflag [#allocation4], 1
    %11 = vsyncpa %s10, 0
    loop: start=0, step=1, limit=4
    $region2: #{tpu_custom_call.1} parent=1 // loop_pre_header
      _
    $region3: #{tpu_custom_call.1} parent=1 // loop_header
      %s13 = sphi 0, %s17
      %p14 = scmp.ge.s32.totalorder %s13, 4
      %s23 = sphi 0, %s25
      %s26 = sphi 0, %s23
      %s27 = sphi 0, %s26
      %s43 = sphi 0, %s27
      %s47 = sphi 0, %s47
      %s49 = sphi 0, %s47
      %s50 = sphi 0, %s49
      %s64 = sphi 0, %s50
      %s68 = sphi 0, %s68
      %s70 = sphi 0, %s68
      %s71 = sphi 0, %s70
      %s85 = sphi 0, %s71
      %s91 = sphi 0, %s93
      %s94 = sphi 0, %s91
      %s95 = sphi 0, %s94
      %s111 = sphi 0, %s95
    $region4: #{tpu_custom_call.1} parent=1 // loop_header_branch
      %16 = sbr.rel (%p14) target = $region8
    $region5: #{tpu_custom_call.1} parent=1 // loop_body
      %s18 = ssub.s32 %s13, 1
      %s19 = ssub.s32 %s13, 2
      %s20 = sadd.s32 %s13, 1
      %s21 = ssub.s32 %s13, %s20
      %p22 = scmp.eq.s32.totalorder %s21, 0
      %s24 = sadd.s32 %s23, 1
      %s25 = scalar_select %p22, %s23, %s24
      %p28 = pneg %p22
      %p29 = scmp.eq.s32.totalorder %s13, 1
      %p30 = por %p28, %p29
      %p31 = scmp.ne.s32.totalorder %s23, %s26
      %p32 = scmp.eq.s32.totalorder %s13, 0
      %p33 = por %p31, %p32
      %p34 = scmp.ne.s32.totalorder %s23, %s26
      %p35 = scmp.eq.s32.totalorder %s18, 1
      %p36 = por %p34, %p35
      %p37 = scmp.ne.s32.totalorder %s26, %s27
      %p38 = scmp.eq.s32.totalorder %s18, 0
      %p39 = por %p37, %p38
      %p40 = scmp.ne.s32.totalorder %s26, %s27
      %p41 = scmp.eq.s32.totalorder %s19, 1
      %p42 = por %p40, %p41
      %p44 = scmp.ne.s32.totalorder %s27, %s43
      %p45 = scmp.eq.s32.totalorder %s19, 0
      %p46 = por %p44, %p45
      %s48 = sadd.s32 %s47, 1
      %p51 = scmp.eq.s32.totalorder %s13, 1
      %p52 = scmp.ne.s32.totalorder %s47, %s49
      %p53 = scmp.eq.s32.totalorder %s13, 0
      %p54 = por %p52, %p53
      %p55 = scmp.ne.s32.totalorder %s47, %s49
      %p56 = scmp.eq.s32.totalorder %s18, 1
      %p57 = por %p55, %p56
      %p58 = scmp.ne.s32.totalorder %s49, %s50
      %p59 = scmp.eq.s32.totalorder %s18, 0
      %p60 = por %p58, %p59
      %p61 = scmp.ne.s32.totalorder %s49, %s50
      %p62 = scmp.eq.s32.totalorder %s19, 1
      %p63 = por %p61, %p62
      %p65 = scmp.ne.s32.totalorder %s50, %s64
      %p66 = scmp.eq.s32.totalorder %s19, 0
      %p67 = por %p65, %p66
      %s69 = sadd.s32 %s68, 1
      %p72 = scmp.eq.s32.totalorder %s13, 1
      %p73 = scmp.ne.s32.totalorder %s68, %s70
      %p74 = scmp.eq.s32.totalorder %s13, 0
      %p75 = por %p73, %p74
      %p76 = scmp.ne.s32.totalorder %s68, %s70
      %p77 = scmp.eq.s32.totalorder %s18, 1
      %p78 = por %p76, %p77
      %p79 = scmp.ne.s32.totalorder %s70, %s71
      %p80 = scmp.eq.s32.totalorder %s18, 0
      %p81 = por %p79, %p80
      %p82 = scmp.ne.s32.totalorder %s70, %s71
      %p83 = scmp.eq.s32.totalorder %s19, 1
      %p84 = por %p82, %p83
      %p86 = scmp.ne.s32.totalorder %s71, %s85
      %p87 = scmp.eq.s32.totalorder %s19, 0
      %p88 = por %p86, %p87
      %s89 = ssub.s32 %s13, %s20
      %p90 = scmp.eq.s32.totalorder %s89, 0
      %s92 = sadd.s32 %s91, 1
      %s93 = scalar_select %p90, %s91, %s92
      %p96 = pneg %p90
      %p97 = scmp.eq.s32.totalorder %s13, 1
      %p98 = por %p96, %p97
      %p99 = scmp.ne.s32.totalorder %s91, %s94
      %p100 = scmp.eq.s32.totalorder %s13, 0
      %p101 = por %p99, %p100
      %p102 = scmp.ne.s32.totalorder %s91, %s94
      %p103 = scmp.eq.s32.totalorder %s18, 1
      %p104 = por %p102, %p103
      %p105 = scmp.ne.s32.totalorder %s94, %s95
      %p106 = scmp.eq.s32.totalorder %s18, 0
      %p107 = por %p105, %p106
      %p108 = scmp.ne.s32.totalorder %s94, %s95
      %p109 = scmp.eq.s32.totalorder %s19, 1
      %p110 = por %p108, %p109
      %p112 = scmp.ne.s32.totalorder %s95, %s111
      %p113 = scmp.eq.s32.totalorder %s19, 0
      %p114 = por %p112, %p113
      %p115 = scmp.le.s32.totalorder 1, %s13
      %p116 = scmp.lt.s32.totalorder %s13, 3
      %p117 = pnand %p115, %p116
      %p118 = pneg %p117
      // Predicated region
      $region9: #{tpu_custom_call.1} parent=5 // pred_check
        _
      $region10: #{tpu_custom_call.1} parent=5 // pred_check_branch
        %120 = sbr.rel (%p117) target = $region12
      $region11: #{tpu_custom_call.1} parent=5 // pred_region
        %s121 = ssub.s32 %s13, 1
        // Predicated region
        $region13: #{tpu_custom_call.1} parent=11 // pred_check
          %p122 = pneg %p60
        $region14: #{tpu_custom_call.1} parent=11 // pred_check_branch
          %124 = sbr.rel (%p122) target = $region16
        $region15: #{tpu_custom_call.1} parent=11 // pred_region
          _
        $region16: #{tpu_custom_call.1} parent=11 // pred_fallthru
          _
        // Predicated region
        $region17: #{tpu_custom_call.1} parent=11 // pred_check
          %p125 = pneg %p81
        $region18: #{tpu_custom_call.1} parent=11 // pred_check_branch
          %127 = sbr.rel (%p125) target = $region20
        $region19: #{tpu_custom_call.1} parent=11 // pred_region
          _
        $region20: #{tpu_custom_call.1} parent=11 // pred_fallthru
          _
      $region12: #{tpu_custom_call.1} parent=5 // pred_fallthru
        _
      %p128 = scmp.lt.s32.totalorder %s13, 2
      // Predicated region
      $region21: #{tpu_custom_call.1} parent=5 // pred_check
        %p129 = pneg %p128
      $region22: #{tpu_custom_call.1} parent=5 // pred_check_branch
        %131 = sbr.rel (%p129) target = $region24
      $region23: #{tpu_custom_call.1} parent=5 // pred_region
        // Predicated region
        $region25: #{tpu_custom_call.1} parent=23 // pred_check
          %p132 = pneg %p33
        $region26: #{tpu_custom_call.1} parent=23 // pred_check_branch
          %134 = sbr.rel (%p132) target = $region28
        $region27: #{tpu_custom_call.1} parent=23 // pred_region
          %s135 = sand.u32 %s23, 1
          %s136 = scalar_lea.sflag [#allocation4], %s135
          %s137 = sand.u32 %s23, 1
          %s138 = smul.addr %s137, 128
          %s139 = scalar_lea.vmem [#allocation3], %s138
          %s140 = smul.u32 16, %s13
          %s142 = ssub.s32 2048, 2048
          %143 = vsyncadd %s136, %s142
          %s144 = smul.addr %s140, 128
          %s145 = scalar_lea.hbm %s0, %s144
          %s146 = sshll.u32 %s139, 4
          %s147 = int_to_ptr.vmem [resolvable:$true] %s146
          %152 = dma.hbm_to_vmem [thread:$0]  %s145, 2048, %s147, %s136, 128, 128, 8
        $region28: #{tpu_custom_call.1} parent=23 // pred_fallthru
          _
      $region24: #{tpu_custom_call.1} parent=5 // pred_fallthru
        _
      %p153 = scmp.le.s32.totalorder 1, %s13
      %p154 = scmp.lt.s32.totalorder %s13, 3
      %p155 = pnand %p153, %p154
      %p156 = pneg %p155
      // Predicated region
      $region29: #{tpu_custom_call.1} parent=5 // pred_check
        _
      $region30: #{tpu_custom_call.1} parent=5 // pred_check_branch
        %158 = sbr.rel (%p155) target = $region32
      $region31: #{tpu_custom_call.1} parent=5 // pred_region
        %s159 = ssub.s32 %s13, 1
        %s160 = sand.u32 %s26, 1
        %s161 = scalar_lea.sflag [#allocation4], %s160
        %s162 = sand.u32 %s26, 1
        %s163 = smul.addr %s162, 128
        %s164 = scalar_lea.vmem [#allocation3], %s163
        // Predicated region
        $region33: #{tpu_custom_call.1} parent=31 // pred_check
          %p165 = pneg %p39
        $region34: #{tpu_custom_call.1} parent=31 // pred_check_branch
          %167 = sbr.rel (%p165) target = $region36
        $region35: #{tpu_custom_call.1} parent=31 // pred_region
          %168 = dma.done %s161, 2048
        $region36: #{tpu_custom_call.1} parent=31 // pred_fallthru
          _
        %s169 = sand.u32 %s26, 1
        %s170 = scalar_lea.sflag [#allocation4], %s169
        %s171 = sand.u32 %s26, 1
        %s172 = smul.addr %s171, 128
        %s173 = scalar_lea.vmem [#allocation3], %s172
        %p174 = pneg %p39
        %p175 = pneg %p36
        %p176 = pneg %p60
        %p177 = pneg %p57
        %p178 = pneg %p81
        %p179 = pneg %p78
        %p180 = pneg %p107
        %p181 = pneg %p104
        %s182 = smul.u32 16, %s18
        %p183 = scmp.lt.s32.totalorder %s182, 31
        %s184 = scalar_select %p183, %s182, 31
        %s185 = smul.addr %s184, 8
        %s186 = scalar_lea.vmem %s3, %s185
        %s187 = smul.u32 16, %s18
        %s188 = smul.u32 16, %s18
        %p189 = scmp.lt.s32.totalorder %s188, 31
        %s190 = scalar_select %p189, %s188, 31
        %s191 = smul.addr %s190, 8
        %s192 = scalar_lea.vmem %s3, %s191
        %s193 = smul.u32 16, %s18
        %v194 = vld [vmem:[%s164] sm:$0xff]
        %v195 = vld [vmem:[%s164 + $0x8] sm:$0xff]
        %v196 = vld [vmem:[%s164 + $0x10] sm:$0xff]
        %v197 = vld [vmem:[%s164 + $0x18] sm:$0xff]
        %v198 = vld [vmem:[%s164 + $0x20] sm:$0xff]
        %v199 = vld [vmem:[%s164 + $0x28] sm:$0xff]
        %v200 = vld [vmem:[%s164 + $0x30] sm:$0xff]
        %v201 = vld [vmem:[%s164 + $0x38] sm:$0xff]
        %v202 = vld [vmem:[%s164 + $0x40] sm:$0xff]
        %v203 = vld [vmem:[%s164 + $0x48] sm:$0xff]
        %v204 = vld [vmem:[%s164 + $0x50] sm:$0xff]
        %v205 = vld [vmem:[%s164 + $0x58] sm:$0xff]
        %v206 = vld [vmem:[%s164 + $0x60] sm:$0xff]
        %v207 = vld [vmem:[%s164 + $0x68] sm:$0xff]
        %v208 = vld [vmem:[%s164 + $0x70] sm:$0xff]
        %v209 = vld [vmem:[%s164 + $0x78] sm:$0xff]
        %v210 = vld [vmem:[%s1] sm:$0xff]
        %v211 = vld [vmem:[%s1 + $0x8] sm:$0xff]
        %v212 = vld [vmem:[%s1 + $0x10] sm:$0xff]
        %v213 = vld [vmem:[%s1 + $0x18] sm:$0xff]
        %v214 = vld [vmem:[%s1 + $0x20] sm:$0xff]
        %v215 = vld [vmem:[%s1 + $0x28] sm:$0xff]
        %v216 = vld [vmem:[%s1 + $0x30] sm:$0xff]
        %v217 = vld [vmem:[%s1 + $0x38] sm:$0xff]
        %v218 = vld [vmem:[%s1 + $0x40] sm:$0xff]
        %v219 = vld [vmem:[%s1 + $0x48] sm:$0xff]
        %v220 = vld [vmem:[%s1 + $0x50] sm:$0xff]
        %v221 = vld [vmem:[%s1 + $0x58] sm:$0xff]
        %v222 = vld [vmem:[%s1 + $0x60] sm:$0xff]
        %v223 = vld [vmem:[%s1 + $0x68] sm:$0xff]
        %v224 = vld [vmem:[%s1 + $0x70] sm:$0xff]
        %v225 = vld [vmem:[%s1 + $0x78] sm:$0xff]
        %s226 = sld [smem:[#allocation2]]
        %v227 = vstv %s226
        %228 = vmatprep.subr.mxu0 0.0
        %229 = vmatpush1.msra.mxu0 %v210
        %230 = vmatprep.subr.mxu0 0.0
        %231 = vmatpush1.msra.mxu0 %v211
        %232 = vmatprep.subr.mxu0 0.0
        %233 = vmatpush1.msra.mxu0 %v212
        %234 = vmatprep.subr.mxu0 0.0
        %235 = vmatpush1.msra.mxu0 %v213
        %236 = vmatprep.subr.mxu0 0.0
        %237 = vmatpush1.msra.mxu0 %v214
        %238 = vmatprep.subr.mxu0 0.0
        %239 = vmatpush1.msra.mxu0 %v215
        %240 = vmatprep.subr.mxu0 0.0
        %241 = vmatpush1.msra.mxu0 %v216
        %242 = vmatprep.subr.mxu0 0.0
        %243 = vmatpush1.msra.mxu0 %v217
        %244 = vmatprep.subr.mxu0 0.0
        %245 = vmatpush1.msra.mxu0 %v218
        %246 = vmatprep.subr.mxu0 0.0
        %247 = vmatpush1.msra.mxu0 %v219
        %248 = vmatprep.subr.mxu0 0.0
        %249 = vmatpush1.msra.mxu0 %v220
        %250 = vmatprep.subr.mxu0 0.0
        %251 = vmatpush1.msra.mxu0 %v221
        %252 = vmatprep.subr.mxu0 0.0
        %253 = vmatpush1.msra.mxu0 %v222
        %254 = vmatprep.subr.mxu0 0.0
        %255 = vmatpush1.msra.mxu0 %v223
        %256 = vmatprep.subr.mxu0 0.0
        %257 = vmatpush1.msra.mxu0 %v224
        %258 = vmatprep.subr.mxu0 0.0
        %259 = vmatpush1.msra.mxu0 %v225
        %260 = vmatprep.subr.mxu0 0.0
        %261 = vmatpush1.msra.mxu0 0.0
        %262 = vmatprep.subr.mxu0 0.0
        %263 = vmatpush1.msra.mxu0 0.0
        %264 = vmatprep.subr.mxu0 0.0
        %265 = vmatpush1.msra.mxu0 0.0
        %266 = vmatprep.subr.mxu0 0.0
        %267 = vmatpush1.msra.mxu0 0.0
        %268 = vmatprep.subr.mxu0 0.0
        %269 = vmatpush1.msra.mxu0 0.0
        %270 = vmatprep.subr.mxu0 0.0
        %271 = vmatpush1.msra.mxu0 0.0
        %272 = vmatprep.subr.mxu0 0.0
        %273 = vmatpush1.msra.mxu0 0.0
        %274 = vmatprep.subr.mxu0 0.0
        %275 = vmatpush1.msra.mxu0 0.0
        %276 = vmatprep.subr.mxu0 0.0
        %277 = vmatpush1.msra.mxu0 0.0
        %278 = vmatprep.subr.mxu0 0.0
        %279 = vmatpush1.msra.mxu0 0.0
        %280 = vmatprep.subr.mxu0 0.0
        %281 = vmatpush1.msra.mxu0 0.0
        %282 = vmatprep.subr.mxu0 0.0
        %283 = vmatpush1.msra.mxu0 0.0
        %284 = vmatprep.subr.mxu0 0.0
        %285 = vmatpush1.msra.mxu0 0.0
        %286 = vmatprep.subr.mxu0 0.0
        %287 = vmatpush1.msra.mxu0 0.0
        %288 = vmatprep.subr.mxu0 0.0
        %289 = vmatpush1.msra.mxu0 0.0
        %290 = vmatprep.subr.mxu0 0.0
        %291 = vmatpush1.msra.mxu0 0.0
        %292 = vmatprep.mubr.f32.mxu0 0.0
        %293 = vmatmul.mubr.f32.gmra.mrb[0].mxu0 %v194
        %v294 = vpop.f32.mrb[0].mxu0
        %v295 = vadd.f32 %v227, %v294
        %v296 = vpop.f32.mrb[0].mxu0
        %297 = vmatprep.mubr.f32.mxu0 0.0
        %298 = vmatmul.mubr.f32.gmra.mrb[0].mxu0 %v195
        %v299 = vpop.f32.mrb[0].mxu0
        %v300 = vadd.f32 %v227, %v299
        %v301 = vpop.f32.mrb[0].mxu0
        %302 = vmatprep.mubr.f32.mxu0 0.0
        %303 = vmatmul.mubr.f32.gmra.mrb[0].mxu0 %v196
        %v304 = vpop.f32.mrb[0].mxu0
        %v305 = vadd.f32 %v227, %v304
        %v306 = vpop.f32.mrb[0].mxu0
        %307 = vmatprep.mubr.f32.mxu0 0.0
        %308 = vmatmul.mubr.f32.gmra.mrb[0].mxu0 %v197
        %v309 = vpop.f32.mrb[0].mxu0
        %v310 = vadd.f32 %v227, %v309
        %v311 = vpop.f32.mrb[0].mxu0
        %312 = vmatprep.mubr.f32.mxu0 0.0
        %313 = vmatmul.mubr.f32.gmra.mrb[0].mxu0 %v198
        %v314 = vpop.f32.mrb[0].mxu0
        %v315 = vadd.f32 %v227, %v314
        %v316 = vpop.f32.mrb[0].mxu0
        %317 = vmatprep.mubr.f32.mxu0 0.0
        %318 = vmatmul.mubr.f32.gmra.mrb[0].mxu0 %v199
        %v319 = vpop.f32.mrb[0].mxu0
        %v320 = vadd.f32 %v227, %v319
        %v321 = vpop.f32.mrb[0].mxu0
        %322 = vmatprep.mubr.f32.mxu0 0.0
        %323 = vmatmul.mubr.f32.gmra.mrb[0].mxu0 %v200
        %v324 = vpop.f32.mrb[0].mxu0
        %v325 = vadd.f32 %v227, %v324
        %v326 = vpop.f32.mrb[0].mxu0
        %327 = vmatprep.mubr.f32.mxu0 0.0
        %328 = vmatmul.mubr.f32.gmra.mrb[0].mxu0 %v201
        %v329 = vpop.f32.mrb[0].mxu0
        %v330 = vadd.f32 %v227, %v329
        %v331 = vpop.f32.mrb[0].mxu0
        %332 = vmatprep.mubr.f32.mxu0 0.0
        %333 = vmatmul.mubr.f32.gmra.mrb[0].mxu0 %v202
        %v334 = vpop.f32.mrb[0].mxu0
        %v335 = vadd.f32 %v227, %v334
        %v336 = vpop.f32.mrb[0].mxu0
        %337 = vmatprep.mubr.f32.mxu0 0.0
        %338 = vmatmul.mubr.f32.gmra.mrb[0].mxu0 %v203
        %v339 = vpop.f32.mrb[0].mxu0
        %v340 = vadd.f32 %v227, %v339
        %v341 = vpop.f32.mrb[0].mxu0
        %342 = vmatprep.mubr.f32.mxu0 0.0
        %343 = vmatmul.mubr.f32.gmra.mrb[0].mxu0 %v204
        %v344 = vpop.f32.mrb[0].mxu0
        %v345 = vadd.f32 %v227, %v344
        %v346 = vpop.f32.mrb[0].mxu0
        %347 = vmatprep.mubr.f32.mxu0 0.0
        %348 = vmatmul.mubr.f32.gmra.mrb[0].mxu0 %v205
        %v349 = vpop.f32.mrb[0].mxu0
        %v350 = vadd.f32 %v227, %v349
        %v351 = vpop.f32.mrb[0].mxu0
        %352 = vmatprep.mubr.f32.mxu0 0.0
        %353 = vmatmul.mubr.f32.gmra.mrb[0].mxu0 %v206
        %v354 = vpop.f32.mrb[0].mxu0
        %v355 = vadd.f32 %v227, %v354
        %v356 = vpop.f32.mrb[0].mxu0
        %357 = vmatprep.mubr.f32.mxu0 0.0
        %358 = vmatmul.mubr.f32.gmra.mrb[0].mxu0 %v207
        %v359 = vpop.f32.mrb[0].mxu0
        %v360 = vadd.f32 %v227, %v359
        %v361 = vpop.f32.mrb[0].mxu0
        %362 = vmatprep.mubr.f32.mxu0 0.0
        %363 = vmatmul.mubr.f32.gmra.mrb[0].mxu0 %v208
        %v364 = vpop.f32.mrb[0].mxu0
        %v365 = vadd.f32 %v227, %v364
        %v366 = vpop.f32.mrb[0].mxu0
        %367 = vmatprep.mubr.f32.mxu0 0.0
        %368 = vmatmul.mubr.f32.gmra.mrb[0].mxu0 %v209
        %v369 = vpop.f32.mrb[0].mxu0
        %v370 = vadd.f32 %v227, %v369
        %v371 = vpop.f32.mrb[0].mxu0
        %372 = vdwg.mxu0
        %vm373 = vcmask 31744
        %374 = vst.msk [vmem:[%s192] sm:$0xff] %vm373, %v295
        %375 = vst.msk [vmem:[%s192 + $0x8] sm:$0xff] %vm373, %v300
        %376 = vst.msk [vmem:[%s192 + $0x10] sm:$0xff] %vm373, %v305
        %377 = vst.msk [vmem:[%s192 + $0x18] sm:$0xff] %vm373, %v310
        %378 = vst.msk [vmem:[%s192 + $0x20] sm:$0xff] %vm373, %v315
        %379 = vst.msk [vmem:[%s192 + $0x28] sm:$0xff] %vm373, %v320
        %380 = vst.msk [vmem:[%s192 + $0x30] sm:$0xff] %vm373, %v325
        %381 = vst.msk [vmem:[%s192 + $0x38] sm:$0xff] %vm373, %v330
        %382 = vst.msk [vmem:[%s192 + $0x40] sm:$0xff] %vm373, %v335
        %383 = vst.msk [vmem:[%s192 + $0x48] sm:$0xff] %vm373, %v340
        %384 = vst.msk [vmem:[%s192 + $0x50] sm:$0xff] %vm373, %v345
        %385 = vst.msk [vmem:[%s192 + $0x58] sm:$0xff] %vm373, %v350
        %386 = vst.msk [vmem:[%s192 + $0x60] sm:$0xff] %vm373, %v355
        %387 = vst.msk [vmem:[%s192 + $0x68] sm:$0xff] %vm373, %v360
        %388 = vst.msk [vmem:[%s192 + $0x70] sm:$0xff] %vm373, %v365
        %389 = vst.msk [vmem:[%s192 + $0x78] sm:$0xff] %vm373, %v370
        %s390 = smul.u32 16, %s18
        %p391 = scmp.lt.s32.totalorder %s390, 31
        %s392 = scalar_select %p391, %s390, 31
        %s393 = smul.addr %s392, 8
        %s394 = scalar_lea.vmem %s3, %s393
        // Predicated region
        $region37: #{tpu_custom_call.1} parent=31 // pred_check
          %p395 = pneg %p104
        $region38: #{tpu_custom_call.1} parent=31 // pred_check_branch
          %397 = sbr.rel (%p395) target = $region40
        $region39: #{tpu_custom_call.1} parent=31 // pred_region
          %s398 = smul.u32 16, %s18
        $region40: #{tpu_custom_call.1} parent=31 // pred_fallthru
          _
      $region32: #{tpu_custom_call.1} parent=5 // pred_fallthru
        _
      %p399 = scmp.le.s32.totalorder 2, %s13
      // Predicated region
      $region41: #{tpu_custom_call.1} parent=5 // pred_check
        %p400 = pneg %p399
      $region42: #{tpu_custom_call.1} parent=5 // pred_check_branch
        %402 = sbr.rel (%p400) target = $region44
      $region43: #{tpu_custom_call.1} parent=5 // pred_region
        %s403 = ssub.s32 %s13, 2
        // Predicated region
        $region45: #{tpu_custom_call.1} parent=43 // pred_check
          %p404 = pneg %p110
        $region46: #{tpu_custom_call.1} parent=43 // pred_check_branch
          %406 = sbr.rel (%p404) target = $region48
        $region47: #{tpu_custom_call.1} parent=43 // pred_region
          %s407 = smul.u32 16, %s19
          %p408 = scmp.lt.s32.totalorder %s407, 31
          %s409 = scalar_select %p408, %s407, 31
          %s410 = smul.addr %s409, 8
          %s411 = scalar_lea.vmem %s3, %s410
        $region48: #{tpu_custom_call.1} parent=43 // pred_fallthru
          _
      $region44: #{tpu_custom_call.1} parent=5 // pred_fallthru
        _
    $region6: #{tpu_custom_call.1} parent=1 // loop_footer
      %s17 = sadd.s32 1, %s13
    $region7: #{tpu_custom_call.1} parent=1 // loop_footer_branch
      %12 = sbr.rel target = $region3
    $region8: #{tpu_custom_call.1} parent=1 // loop_exit
      _
    %412 = vsyncpa [#allocation4], 1
    %s413 = scalar_lea.sflag [#allocation4], 1
    %414 = vsyncpa %s413, 1

</llo_original>
